<compile_context>
chip_gen: v5e
topology: v5e:2x2
jax: 0.10.0
libtpu: 0.0.40
codegen_flags: <defaults>
</compile_context>

<pallas_src>
import functools
import math

import jax
import jax.numpy as jnp
from jax.experimental import pallas as pl
from jax.experimental.pallas import tpu as pltpu

EPS = 1e-12

# bf16 operands on the MXU (accumulation stays f32 via preferred_element_type).
# Set to None for a fully-f32 matmul path.
MATMUL_DTYPE = jnp.bfloat16


# ---------------------------------------------------------------------------
# helpers
# ---------------------------------------------------------------------------
def _cast(x):
    return x.astype(MATMUL_DTYPE) if MATMUL_DTYPE is not None else x


def _mm(x, w):
    """x[M, K] @ w[K, N] -> f32[M, N].  Weights are pre-transposed to [in, out]."""
    return jax.lax.dot_general(
        _cast(x), _cast(w), dimension_numbers=(((1,), (0,)), ((), ())),
        preferred_element_type=jnp.float32)


def _row_tile(n, target=256):
    """Largest multiple-of-8 divisor of n that is <= target; otherwise fall back
    to the full extent (a block equal to the array dim is always legal)."""
    for t in range(min(target, n), 0, -1):
        if n % t == 0 and t % 8 == 0:
            return t
    return n


def _col_tile(n, target=512, align=128):
    """Largest multiple-of-`align` divisor of n <= target, else full extent."""
    for t in range(min(target, n), 0, -1):
        if n % t == 0 and t % align == 0:
            return t
    return n


# ---------------------------------------------------------------------------
# kernel 1: fused Q/K/V projection  (single [tm,H] x [H,3H] MXU pass)
# ---------------------------------------------------------------------------
def dense_kernel(x_ref, w_ref, b_ref, o_ref):
    o_ref[...] = (_mm(x_ref[...], w_ref[...]) + b_ref[...]).astype(o_ref.dtype)


def fused_qkv(x2, wqkv, bqkv, *, tm=256):
    N, H = x2.shape
    H3 = wqkv.shape[1]
    tm = _row_tile(N, tm)
    cost = pl.CostEstimate(
        flops=int(2 * N * H * H3),
        transcendentals=0,
        bytes_accessed=int(4 * (N * H + N * H3) + 2 * (H * H3 + H3)),
    )
    return pl.pallas_call(
        dense_kernel,
        out_shape=jax.ShapeDtypeStruct((N, H3), x2.dtype),
        grid_spec=pltpu.PrefetchScalarGridSpec(
            num_scalar_prefetch=0,
            grid=(N // tm,),
            in_specs=[
                pl.BlockSpec((tm, H), lambda i: (i, 0)),
                # constant index_map -> fetched once, resident across row tiles
                pl.BlockSpec((H, H3), lambda i: (0, 0)),
                pl.BlockSpec((1, H3), lambda i: (0, 0)),
            ],
            out_specs=pl.BlockSpec((tm, H3), lambda i: (i, 0)),
        ),
        compiler_params=pltpu.CompilerParams(dimension_semantics=("parallel",)),
        cost_estimate=cost,
    )(x2, wqkv, bqkv.reshape(1, H3))


# ---------------------------------------------------------------------------
# kernel 2: per-batch, all-heads scaled-dot-product softmax attention,
#           operating directly on the [B, S, 3, NH, DH] QKV slab (no transposes)
# ---------------------------------------------------------------------------
def attn_kernel(q_ref, k_ref, v_ref, mask_ref, o_ref, *, scale):
    q = q_ref[...]                                   # [S, NH, DH]
    k = k_ref[...]                                   # [S, NH, DH]
    v = v_ref[...]                                   # [S, NH, DH]
    scores = jnp.einsum("qhd,khd->hqk", _cast(q), _cast(k),
                        preferred_element_type=jnp.float32) * scale
    scores = scores + mask_ref[...]                  # [1, S] -> broadcast on keys
    m = jnp.max(scores, axis=-1, keepdims=True)
    e = jnp.exp(scores - m)
    denom = jnp.sum(e, axis=-1, keepdims=True)
    # TODO(synk): attention-prob dropout is eval-mode identity (training not implemented).
    p = e * pl.reciprocal(denom, approx=True)
    ctx = jnp.einsum("hqk,khd->qhd", _cast(p), _cast(v),
                     preferred_element_type=jnp.float32)
    o_ref[...] = ctx.astype(o_ref.dtype)


def attention_core(qkv5, mask3, *, scale):
    B, S, _three, NH, DH = qkv5.shape

    def qkv_spec(which):
        return pl.BlockSpec((None, S, None, NH, DH),
                            lambda b: (b, 0, which, 0, 0))

    mask_spec = pl.BlockSpec((None, 1, S), lambda b: (b, 0, 0))
    out_spec = pl.BlockSpec((None, S, NH, DH), lambda b: (b, 0, 0, 0))

    cost = pl.CostEstimate(
        flops=int(B * NH * 4 * S * S * DH),
        transcendentals=int(B * NH * S * S),
        bytes_accessed=int(4 * (4 * B * S * NH * DH + B * S)),
    )
    # TODO(synk): for long sequences replace with flash-style KV tiling
    # (online softmax) instead of the full [S, S] scores per batch.
    return pl.pallas_call(
        functools.partial(attn_kernel, scale=scale),
        out_shape=jax.ShapeDtypeStruct((B, S, NH, DH), qkv5.dtype),
        grid_spec=pltpu.PrefetchScalarGridSpec(
            num_scalar_prefetch=0,
            grid=(B,),
            in_specs=[qkv_spec(0), qkv_spec(1), qkv_spec(2), mask_spec],
            out_specs=out_spec,
        ),
        compiler_params=pltpu.CompilerParams(dimension_semantics=("parallel",)),
        cost_estimate=cost,
    )(qkv5, qkv5, qkv5, mask3)


# ---------------------------------------------------------------------------
# kernel 3: dense + bias + residual + LayerNorm  (SelfOutput)
# ---------------------------------------------------------------------------
def dense_res_ln_kernel(x_ref, res_ref, w_ref, b_ref, g_ref, be_ref, o_ref):
    y = _mm(x_ref[...], w_ref[...]) + b_ref[...]
    # TODO(synk): hidden dropout is eval-mode identity (training not implemented).
    y = y + res_ref[...].astype(jnp.float32)
    u = jnp.mean(y, axis=-1, keepdims=True)
    d = y - u
    s = jnp.mean(d * d, axis=-1, keepdims=True)
    y = d * jax.lax.rsqrt(s + EPS)
    o_ref[...] = (g_ref[...] * y + be_ref[...]).astype(o_ref.dtype)


def dense_residual_layernorm(x2, res2, w_t, b, gamma, beta, *, tm=256):
    N, Din = x2.shape
    Dout = w_t.shape[1]
    assert w_t.shape == (Din, Dout) and res2.shape == (N, Dout)
    tm = _row_tile(N, tm)
    cost = pl.CostEstimate(
        flops=int(2 * N * Din * Dout + 8 * N * Dout),
        transcendentals=int(N),
        bytes_accessed=int(4 * (N * Din + 2 * N * Dout) + 2 * (Din * Dout + 3 * Dout)),
    )
    return pl.pallas_call(
        dense_res_ln_kernel,
        out_shape=jax.ShapeDtypeStruct((N, Dout), x2.dtype),
        grid_spec=pltpu.PrefetchScalarGridSpec(
            num_scalar_prefetch=0,
            grid=(N // tm,),
            in_specs=[
                pl.BlockSpec((tm, Din), lambda i: (i, 0)),      # x rows
                pl.BlockSpec((tm, Dout), lambda i: (i, 0)),     # residual rows
                pl.BlockSpec((Din, Dout), lambda i: (0, 0)),    # weight (resident)
                pl.BlockSpec((1, Dout), lambda i: (0, 0)),      # bias
                pl.BlockSpec((1, Dout), lambda i: (0, 0)),      # gamma
                pl.BlockSpec((1, Dout), lambda i: (0, 0)),      # beta
            ],
            out_specs=pl.BlockSpec((tm, Dout), lambda i: (i, 0)),
        ),
        compiler_params=pltpu.CompilerParams(dimension_semantics=("parallel",)),
        cost_estimate=cost,
    )(x2, res2, w_t, b.reshape(1, Dout), gamma.reshape(1, Dout), beta.reshape(1, Dout))


# ---------------------------------------------------------------------------
# kernel 4: fused FFN  (Intermediate dense+ReLU  ->  Output dense, K-tiled over
# the intermediate axis with an f32 accumulator  ->  +bias +residual +LayerNorm)
# The [N, I] intermediate never touches HBM.
# ---------------------------------------------------------------------------
def ffn_kernel(x_ref, res_ref, wi_ref, bi_ref, w2_ref, b2_ref, g_ref, be_ref,
               o_ref, acc_ref):
    k = pl.program_id(1)

    @pl.when(k == 0)
    def _():
        acc_ref[...] = jnp.zeros_like(acc_ref)

    inter = jnp.maximum(_mm(x_ref[...], wi_ref[...]) + bi_ref[...], 0.0)  # [tm, tk]
    acc_ref[...] += _mm(inter, w2_ref[...])                               # [tm, H]

    @pl.when(k == pl.num_programs(1) - 1)
    def _():
        y = acc_ref[...] + b2_ref[...] + res_ref[...].astype(jnp.float32)
        u = jnp.mean(y, axis=-1, keepdims=True)
        d = y - u
        s = jnp.mean(d * d, axis=-1, keepdims=True)
        y = d * jax.lax.rsqrt(s + EPS)
        o_ref[...] = (g_ref[...] * y + be_ref[...]).astype(o_ref.dtype)


def fused_ffn(x2, res2, wi_t, bi, w2_t, b2, gamma, beta, *, tm=256, tk=512):
    N, H = x2.shape
    I = wi_t.shape[1]
    assert wi_t.shape == (H, I) and w2_t.shape == (I, H) and res2.shape == (N, H)
    tm = _row_tile(N, tm)
    tk = _col_tile(I, tk)
    cost = pl.CostEstimate(
        flops=int(4 * N * H * I + 10 * N * H),
        transcendentals=int(N),
        bytes_accessed=int(4 * (3 * N * H) + 2 * (2 * H * I + I + 4 * H)),
    )
    return pl.pallas_call(
        ffn_kernel,
        out_shape=jax.ShapeDtypeStruct((N, H), x2.dtype),
        grid_spec=pltpu.PrefetchScalarGridSpec(
            num_scalar_prefetch=0,
            grid=(N // tm, I // tk),
            in_specs=[
                pl.BlockSpec((tm, H), lambda i, k: (i, 0)),     # x rows (resident over k)
                pl.BlockSpec((tm, H), lambda i, k: (i, 0)),     # residual rows
                pl.BlockSpec((H, tk), lambda i, k: (0, k)),     # wi chunk
                pl.BlockSpec((1, tk), lambda i, k: (0, k)),     # bi chunk
                pl.BlockSpec((tk, H), lambda i, k: (k, 0)),     # w2 chunk
                pl.BlockSpec((1, H), lambda i, k: (0, 0)),      # b2
                pl.BlockSpec((1, H), lambda i, k: (0, 0)),      # gamma
                pl.BlockSpec((1, H), lambda i, k: (0, 0)),      # beta
            ],
            out_specs=pl.BlockSpec((tm, H), lambda i, k: (i, 0)),
            scratch_shapes=[pltpu.VMEM((tm, H), jnp.float32)],
        ),
        compiler_params=pltpu.CompilerParams(
            dimension_semantics=("parallel", "arbitrary")),
        cost_estimate=cost,
    )(x2, res2, wi_t, bi.reshape(1, I), w2_t, b2.reshape(1, H),
      gamma.reshape(1, H), beta.reshape(1, H))


# ---------------------------------------------------------------------------
# parameter prep: done ONCE (transpose to [in, out], concat QKV)
# ---------------------------------------------------------------------------
def prepare_params(raw):
    return dict(
        wqkv=jnp.concatenate([raw["wq"].T, raw["wk"].T, raw["wv"].T], axis=1),
        bqkv=jnp.concatenate([raw["bq"], raw["bk"], raw["bv"]]),
        wo_t=raw["wo"].T, bo=raw["bo"],
        ln1_g=raw["ln1_g"], ln1_b=raw["ln1_b"],
        wi_t=raw["wi"].T, bi=raw["bi"],
        w2_t=raw["w2"].T, b2=raw["b2"],
        ln2_g=raw["ln2_g"], ln2_b=raw["ln2_b"],
    )


# ---------------------------------------------------------------------------
# Encoder forward (eval mode)
# ---------------------------------------------------------------------------
def encoder_forward(hidden_states, attention_mask, params, *, num_heads,
                    tm=256, tk=512):
    B, S, H = hidden_states.shape
    N = B * S
    DH = H // num_heads
    x2 = hidden_states.reshape(N, H)

    # --- SelfAttention: fused QKV projection -> one lane-dense [N, 3H] slab ---
    qkv2 = fused_qkv(x2, params["wqkv"], params["bqkv"], tm=tm)
    qkv5 = qkv2.reshape(B, S, 3, num_heads, DH)          # contiguous, free reshape

    # TODO(synk): only masks broadcastable from [B, 1, 1, S] (standard extended
    # additive mask) are supported; fully general [B, H, S, S] masks are not.
    mask3 = jnp.broadcast_to(attention_mask, (B, 1, 1, S)).reshape(B, 1, S)
    mask3 = mask3.astype(jnp.float32)

    ctx4 = attention_core(qkv5, mask3, scale=1.0 / math.sqrt(DH))   # [B,S,NH,DH]
    ctx2 = ctx4.reshape(N, H)                             # free reshape, no transpose

    # --- SelfOutput: dense -> (dropout=id) -> +residual -> LayerNorm ---
    attn_out = dense_residual_layernorm(
        ctx2, x2, params["wo_t"], params["bo"],
        params["ln1_g"], params["ln1_b"], tm=tm)

    # --- Intermediate + Output fused (no [N, I] HBM round-trip) ---
    out2 = fused_ffn(attn_out, attn_out, params["wi_t"], params["bi"],
                     params["w2_t"], params["b2"],
                     params["ln2_g"], params["ln2_b"], tm=tm, tk=tk)

    return out2.reshape(B, S, H)


# ---------------------------------------------------------------------------
# pure-JAX reference (mirrors the PyTorch module in eval mode, same matmul
# operand-cast policy so the comparison is apples-to-apples)
# ---------------------------------------------------------------------------
def encoder_ref(hidden_states, attention_mask, params, *, num_heads):
    B, S, H = hidden_states.shape
    DH = H // num_heads

    def linear(x, w_t, b):
        y = jax.lax.dot_general(_cast(x.reshape(-1, x.shape[-1])), _cast(w_t),
                                (((1,), (0,)), ((), ())),
                                preferred_element_type=jnp.float32)
        return y.reshape(x.shape[:-1] + (w_t.shape[1],)) + b

    def layernorm(y, g, be):
        u = jnp.mean(y, axis=-1, keepdims=True)
        s = jnp.mean((y - u) ** 2, axis=-1, keepdims=True)
        return g * (y - u) / jnp.sqrt(s + EPS) + be

    qkv = linear(hidden_states, params["wqkv"], params["bqkv"])
    q, k, v = jnp.split(qkv, 3, axis=-1)

    def split(t):
        return t.reshape(B, S, num_heads, DH).transpose(0, 2, 1, 3)

    qh, kh, vh = split(q), split(k), split(v)
    scores = jnp.einsum("bhqd,bhkd->bhqk", _cast(qh), _cast(kh),
                        preferred_element_type=jnp.float32) / math.sqrt(DH)
    scores = scores + attention_mask
    probs = jax.nn.softmax(scores, axis=-1)
    ctx = jnp.einsum("bhqk,bhkd->bhqd", _cast(probs), _cast(vh),
                     preferred_element_type=jnp.float32)
    ctx = ctx.transpose(0, 2, 1, 3).reshape(B, S, H)

    attn_out = layernorm(linear(ctx, params["wo_t"], params["bo"]) + hidden_states,
                         params["ln1_g"], params["ln1_b"])
    inter = jax.nn.relu(linear(attn_out, params["wi_t"], params["bi"]))
    out = layernorm(linear(inter, params["w2_t"], params["b2"]) + attn_out,
                    params["ln2_g"], params["ln2_b"])
    return out


# ---------------------------------------------------------------------------
if __name__ == "__main__":
    B, S, H, NH, I = 2, 8, 32, 4, 64  # batch, seq, hidden, heads, intermediate

    key = jax.random.PRNGKey(0)
    keys = jax.random.split(key, 14)

    def linear_init(kw, kb, out_dim, in_dim):
        bound = 1.0 / math.sqrt(in_dim)
        w = jax.random.uniform(kw, (out_dim, in_dim), minval=-bound, maxval=bound,
                               dtype=jnp.float32)
        b = jax.random.uniform(kb, (out_dim,), minval=-bound, maxval=bound,
                               dtype=jnp.float32)
        return w, b

    wq, bq = linear_init(keys[0], keys[1], H, H)
    wk, bk = linear_init(keys[2], keys[3], H, H)
    wv, bv = linear_init(keys[4], keys[5], H, H)
    wo, bo = linear_init(keys[6], keys[7], H, H)
    wi, bi = linear_init(keys[8], keys[9], I, H)
    w2, b2 = linear_init(keys[10], keys[11], H, I)

    raw_params = dict(
        wq=wq, bq=bq, wk=wk, bk=bk, wv=wv, bv=bv,
        wo=wo, bo=bo,
        ln1_g=jnp.ones((H,), jnp.float32), ln1_b=jnp.zeros((H,), jnp.float32),
        wi=wi, bi=bi,
        w2=w2, b2=b2,
        ln2_g=jnp.ones((H,), jnp.float32), ln2_b=jnp.zeros((H,), jnp.float32),
    )
    params = prepare_params(raw_params)   # one-time weight transpose / QKV concat

    hidden_states = jax.random.normal(keys[12], (B, S, H), dtype=jnp.float32)

    # standard BERT-style additive extended mask [B, 1, 1, S]
    valid = jnp.ones((B, S), dtype=jnp.float32)
    valid = valid.at[1, S - 3:].set(0.0)            # mask last 3 tokens of batch 1
    attention_mask = ((1.0 - valid) * -10000.0)[:, None, None, :]

    out = encoder_forward(hidden_states, attention_mask, params, num_heads=NH)
    out = jax.block_until_ready(out)

    ref = encoder_ref(hidden_states, attention_mask, params, num_heads=NH)
    assert out.shape == ref.shape, "shape mismatch vs reference"
    assert jnp.allclose(out, ref, atol=1e-2, rtol=1e-2), (
        "mismatch vs reference: max abs err = %e"
        % float(jnp.max(jnp.abs(out - ref))))

    print("KERNEL_OK")
</pallas_src>

<mosaic_0001>
module attributes {stable_mosaic.version = 11 : i64} {
  func.func @dense_kernel(%arg0: i32, %arg1: memref<16x32xf32, #tpu.memory_space<vmem>>, %arg2: memref<32x96xf32, #tpu.memory_space<vmem>>, %arg3: memref<1x96xf32, #tpu.memory_space<vmem>>, %arg4: memref<16x96xf32, #tpu.memory_space<vmem>>) attributes {dimension_semantics = [#tpu.dimension_semantics<parallel>], iteration_bounds = array<i64: 1>, scalar_prefetch = 0 : i64, scratch_operands = 0 : i64, tpu.core_type = #tpu.core_type<tc>, window_params = [{transform_indices = @transform_0, window_bounds = array<i64: 16, 32>}, {pipeline_mode = #tpu.pipeline_mode<synchronous>, transform_indices = @transform_1, window_bounds = array<i64: 32, 96>}, {pipeline_mode = #tpu.pipeline_mode<synchronous>, transform_indices = @transform_2, window_bounds = array<i64: 1, 96>}, {transform_indices = @transform_3, window_bounds = array<i64: 16, 96>}]} {
    %c0 = arith.constant 0 : index
    %c0_0 = arith.constant 0 : index
    %0 = vector.load %arg1[%c0, %c0_0] : memref<16x32xf32, #tpu.memory_space<vmem>>, vector<16x32xf32>
    %c0_1 = arith.constant 0 : index
    %c0_2 = arith.constant 0 : index
    %1 = vector.load %arg2[%c0_1, %c0_2] : memref<32x96xf32, #tpu.memory_space<vmem>>, vector<32x96xf32>
    %2 = arith.truncf %0 : vector<16x32xf32> to vector<16x32xbf16>
    %3 = arith.truncf %1 : vector<32x96xf32> to vector<32x96xbf16>
    %cst = arith.constant dense<0.000000e+00> : vector<16x96xf32>
    %4 = tpu.matmul %2, %3, %cst {dimension_numbers = #tpu.dot_dimension_numbers<[1], [0], [0], [1], [0, 0, 1, 1], [], []>} : vector<16x32xbf16>, vector<32x96xbf16>, vector<16x96xf32> -> vector<16x96xf32>
    %c0_3 = arith.constant 0 : index
    %c0_4 = arith.constant 0 : index
    %5 = vector.load %arg3[%c0_3, %c0_4] : memref<1x96xf32, #tpu.memory_space<vmem>>, vector<1x96xf32>
    %6 = vector.broadcast %5 : vector<1x96xf32> to vector<16x96xf32>
    %7 = arith.addf %4, %6 : vector<16x96xf32>
    %c0_5 = arith.constant 0 : index
    %c0_6 = arith.constant 0 : index
    %8 = vector.load %arg4[%c0_5, %c0_6] : memref<16x96xf32, #tpu.memory_space<vmem>>, vector<16x96xf32>
    tpu.vector_store %arg4[%c0_5, %c0_6], %7 {strides = array<i32>} : memref<16x96xf32, #tpu.memory_space<vmem>>, vector<16x96xf32>,
    return
  }
  func.func @transform_0(%arg0: i32) -> (i32, i32) {
    %c0_i32 = arith.constant 0 : i32
    %c0_i32_0 = arith.constant 0 : i32
    return %arg0, %c0_i32 : i32, i32
  }
  func.func @transform_1(%arg0: i32) -> (i32, i32) {
    %c0_i32 = arith.constant 0 : i32
    %c0_i32_0 = arith.constant 0 : i32
    %c0_i32_1 = arith.constant 0 : i32
    return %c0_i32, %c0_i32_0 : i32, i32
  }
  func.func @transform_2(%arg0: i32) -> (i32, i32) {
    %c0_i32 = arith.constant 0 : i32
    %c0_i32_0 = arith.constant 0 : i32
    %c0_i32_1 = arith.constant 0 : i32
    return %c0_i32, %c0_i32_0 : i32, i32
  }
  func.func @transform_3(%arg0: i32) -> (i32, i32) {
    %c0_i32 = arith.constant 0 : i32
    %c0_i32_0 = arith.constant 0 : i32
    return %arg0, %c0_i32 : i32, i32
  }
}

</mosaic_0001>

<llo_original>
// kernel: tpu_custom_call.1
$region0: #{tpu_custom_call.1}
  #allocation0 [shape = 'u32[]', space=smem, size = 0x4, offset = 0x4, fixed_abs, tag = 'smem constant byte address 0x4 - core index']
  #allocation1 [shape = 'u32[72,128]{1,0:T(1,128)}', space=vmem, size = 0x9000, scoped, tag = 'internal scratch']
  %s0 = inlined_call_operand.hbm [shape: f32[16,32], index: 0, kind: input, shape index: {}]
  %s1 = inlined_call_operand.hbm [shape: f32[32,96], index: 1, kind: input, shape index: {}]
  %s2 = inlined_call_operand.vmem [shape: f32[1,96], index: 2, kind: input, shape index: {}]
  %s3 = inlined_call_operand.hbm [shape: f32[16,96], index: 3, kind: output, shape index: {}]
  %s4 = sld [smem:[#allocation0]]
  $region30: #{tpu_custom_call.1} parent=0
    _
  %s6 = ssub.s32 1, %s4
  %s7 = scalar_select 0, %s6, %s4
  $region1: #{tpu_custom_call.1} parent=0
    #allocation2 [shape = 'u8[8192]{0}', space=vmem, size = 0x2000, scoped, tag = 'input window, operand 0, single buffered']
    #allocation3 [shape = 's32[1]{0}', space=sflag, size = 0x4, scoped, tag = 'scoped memory for tpu_custom_call.1']
    #allocation4 [shape = 's32[1]{0}', space=sflag, size = 0x4, scoped, tag = 'scoped memory for tpu_custom_call.1']
    #allocation5 [shape = 'u8[16384]{0}', space=vmem, size = 0x4000, scoped, tag = 'input window, operand 1, single buffered']
    #allocation6 [shape = 's32[1]{0}', space=sflag, size = 0x4, scoped, tag = 'scoped memory for tpu_custom_call.1']
    #allocation7 [shape = 'u8[8192]{0}', space=vmem, size = 0x2000, scoped, tag = 'output window, operand 0, single buffered']
    %8 = vsyncpa [#allocation3], 0
    %9 = vsyncpa [#allocation6], 0
    %10 = vsyncpa [#allocation4], 0
    // Predicated region
    $region2: #{tpu_custom_call.1} parent=1 // pred_check
      _
    $region3: #{tpu_custom_call.1} parent=1 // pred_check_branch
      %12 = sbr.rel (0) target = $region5
    $region4: #{tpu_custom_call.1} parent=1 // pred_region
      %14 = vsyncadd [#allocation3], 0
      %s15 = sshll.u32 %s0, 4
      %s16 = int_to_ptr.hbm [resolvable:$true] %s15
      %s17 = sshll.u32 [#allocation2], 4
      %s18 = int_to_ptr.vmem [resolvable:$true] %s17
      %23 = dma.hbm_to_vmem [thread:$0]  %s16, 256, %s18, [#allocation3], 128, 128, 8
    $region5: #{tpu_custom_call.1} parent=1 // pred_fallthru
      _
    // Predicated region
    $region6: #{tpu_custom_call.1} parent=1 // pred_check
      _
    $region7: #{tpu_custom_call.1} parent=1 // pred_check_branch
      %25 = sbr.rel (0) target = $region9
    $region8: #{tpu_custom_call.1} parent=1 // pred_region
      %27 = vsyncadd [#allocation6], 0
      %s28 = sshll.u32 %s1, 4
      %s29 = int_to_ptr.hbm [resolvable:$true] %s28
      %s30 = sshll.u32 [#allocation5], 4
      %s31 = int_to_ptr.vmem [resolvable:$true] %s30
      %36 = dma.hbm_to_vmem [thread:$0]  %s29, 512, %s31, [#allocation6], 128, 128, 8
    $region9: #{tpu_custom_call.1} parent=1 // pred_fallthru
      _
    // Predicated region
    $region10: #{tpu_custom_call.1} parent=1 // pred_check
      _
    $region11: #{tpu_custom_call.1} parent=1 // pred_check_branch
      %38 = sbr.rel (0) target = $region13
    $region12: #{tpu_custom_call.1} parent=1 // pred_region
      _
    $region13: #{tpu_custom_call.1} parent=1 // pred_fallthru
      _
    // Predicated region
    $region14: #{tpu_custom_call.1} parent=1 // pred_check
      _
    $region15: #{tpu_custom_call.1} parent=1 // pred_check_branch
      %40 = sbr.rel (0) target = $region17
    $region16: #{tpu_custom_call.1} parent=1 // pred_region
      %42 = dma.done [#allocation3], 256
    $region17: #{tpu_custom_call.1} parent=1 // pred_fallthru
      _
    // Predicated region
    $region18: #{tpu_custom_call.1} parent=1 // pred_check
      _
    $region19: #{tpu_custom_call.1} parent=1 // pred_check_branch
      %44 = sbr.rel (0) target = $region21
    $region20: #{tpu_custom_call.1} parent=1 // pred_region
      %46 = dma.done [#allocation6], 512
    $region21: #{tpu_custom_call.1} parent=1 // pred_fallthru
      _
    %v48 = vld [vmem:[#allocation2] sm:$0xff]
    %v49 = vld [vmem:[#allocation2 + $0x8] sm:$0xff]
    %v50 = vld [vmem:[#allocation5] sm:$0xff]
    %v51 = vld [vmem:[#allocation5 + $0x8] sm:$0xff]
    %v52 = vld [vmem:[#allocation5 + $0x10] sm:$0xff]
    %v53 = vld [vmem:[#allocation5 + $0x18] sm:$0xff]
    %v54 = vpack.c.bf16 %v49, %v48
    %v55 = vpack.c.bf16 %v51, %v50
    %v56 = vpack.c.bf16 %v53, %v52
    %v57 = vld [vmem:[%s2] sm:$0x1]
    %v59 = vperm.slane %v57, 0
    %vm61 = vcmask 261120
    %v63 = vsel %vm61, %v54, 0
    %65 = vmatpush.bf16.msra.mxu0 0
    %66 = vmatpush.bf16.msra.mxu0 0
    %67 = vmatpush.bf16.msra.mxu0 0
    %68 = vmatpush.bf16.msra.mxu0 0
    %69 = vmatpush.bf16.msra.mxu0 0
    %70 = vmatpush.bf16.msra.mxu0 0
    %71 = vmatpush.bf16.msra.mxu0 %v56
    %72 = vmatpush.bf16.msra.mxu0 %v55
    %73 = vmatmul.bf16.gmra.mxu0 %v63
    %v74 = vpop.f32.mrf.mxu0
    %v75 = vadd.f32 %v59, %v74
    %v76 = vpop.f32.mrf.mxu0
    %v77 = vadd.f32 %v59, %v76
    %78 = vdwg.mxu0
    %vm79 = vcmask 785408
    %80 = vst.msk [vmem:[#allocation7] sm:$0xff] %vm79, %v75
    %81 = vst.msk [vmem:[#allocation7 + $0x8] sm:$0xff] %vm79, %v77
    // Predicated region
    $region22: #{tpu_custom_call.1} parent=1 // pred_check
      _
    $region23: #{tpu_custom_call.1} parent=1 // pred_check_branch
      %83 = sbr.rel (0) target = $region25
    $region24: #{tpu_custom_call.1} parent=1 // pred_region
      %85 = vsyncadd [#allocation4], 0
      %s86 = sshll.u32 [#allocation7], 4
      %s87 = int_to_ptr.vmem [resolvable:$true] %s86
      %s88 = sshll.u32 %s3, 4
      %s89 = int_to_ptr.hbm [resolvable:$true] %s88
      %94 = dma.vmem_to_hbm [thread:$0]  %s87, 256, %s89, [#allocation4], 128, 128, 8
    $region25: #{tpu_custom_call.1} parent=1 // pred_fallthru
      _
    // Predicated region
    $region26: #{tpu_custom_call.1} parent=1 // pred_check
      _
    $region27: #{tpu_custom_call.1} parent=1 // pred_check_branch
      %96 = sbr.rel (0) target = $region29
    $region28: #{tpu_custom_call.1} parent=1 // pred_region
      %98 = dma.done [#allocation4], 256
    $region29: #{tpu_custom_call.1} parent=1 // pred_fallthru
      _
    %99 = vsyncpa [#allocation3], 1
    %100 = vsyncpa [#allocation6], 1
    %101 = vsyncpa [#allocation4], 1

</llo_original>
